<compile_context>
chip_gen: v6e
topology: v6e:2x2x1
jax: 0.10.0
libtpu: 0.0.40
codegen_flags: <defaults>
</compile_context>

<pallas_src>
import functools

import numpy as np
import jax
import jax.numpy as jnp
from jax.experimental import pallas as pl
from jax.experimental.pallas import tpu as pltpu


def _round_up(a, b):
    return (a + b - 1) // b * b


def _fkan_kernel(freqs_ref, x_ref, w_ref, params_ref, o_ref, *,
                 grid_size, out_dim, eps, use_recurrence, matmul_dtype):
    """One row-tile of the FKAN forward.

    freqs_ref : SMEM (grid_size,) f32
    x_ref     : VMEM (TN, D) f32
    w_ref     : VMEM (2*G*D, O_pad) matmul_dtype   (cos rows then sin rows)
    params_ref: VMEM (3, O_pad) f32                (bias, gamma, beta)
    o_ref     : VMEM (TN, O_pad) out dtype
    """
    x = x_ref[...]                                   # (TN, D) f32
    mm = matmul_dtype

    # ---- Fourier basis, assembled in registers (single lane-dense slab) -----
    # Column layout: [cos harmonic 0..G-1 | sin harmonic 0..G-1], each D wide.
    if use_recurrence:
        # freqs[k] == (k+1) * base  -> angle-addition recurrence: 1 cos + 1 sin
        # per (n, i) instead of 2*G transcendentals (EUP has a single slot).
        base = freqs_ref[0]
        c1 = jnp.cos(base * x)
        s1 = jnp.sin(base * x)
        cos_blocks = [c1.astype(mm)]
        sin_blocks = [s1.astype(mm)]
        ck, sk = c1, s1                              # recurrence stays in f32
        for _ in range(1, grid_size):
            ck, sk = ck * c1 - sk * s1, sk * c1 + ck * s1
            cos_blocks.append(ck.astype(mm))
            sin_blocks.append(sk.astype(mm))
    else:
        cos_blocks, sin_blocks = [], []
        for k in range(grid_size):
            ph = freqs_ref[k] * x
            cos_blocks.append(jnp.cos(ph).astype(mm))
            sin_blocks.append(jnp.sin(ph).astype(mm))

    basis = jnp.concatenate(cos_blocks + sin_blocks, axis=-1)   # (TN, 2*G*D)

    # ---- One fused MXU matmul over K = 2*G*D, f32 accumulate ----------------
    out = jnp.dot(basis, w_ref[...], preferred_element_type=jnp.float32)
    out = out + params_ref[0:1, :]                               # + bias

    # ---- LayerNorm over the REAL out_dim columns (masked, two-pass var) -----
    col = jax.lax.broadcasted_iota(jnp.int32, out.shape, 1)
    mask = col < out_dim
    inv_o = jnp.float32(1.0 / out_dim)
    out_m = jnp.where(mask, out, 0.0)
    mean = jnp.sum(out_m, axis=-1, keepdims=True) * inv_o
    diff = jnp.where(mask, out_m - mean, 0.0)
    var = jnp.sum(diff * diff, axis=-1, keepdims=True) * inv_o
    normed = diff * jax.lax.rsqrt(var + eps)
    o_ref[...] = (normed * params_ref[1:2, :] + params_ref[2:3, :]
                  ).astype(o_ref.dtype)


def _tpu_kind():
    try:
        return jax.devices()[0].device_kind.lower()
    except Exception:
        return ""


def fourier_kan_forward(x, cos_amps, sin_amps, bias, freqs, gamma, beta, *,
                        eps=1e-5, row_tile=None, matmul_dtype=jnp.bfloat16,
                        out_dtype=jnp.float32, harmonic_recurrence=None):
    """x: (..., input_dim) -> (N, output_dim), N = prod(leading dims)."""
    out_dim, in_dim, grid_size = cos_amps.shape
    k_dim = 2 * grid_size * in_dim
    o_pad = _round_up(out_dim, 128)

    x2d = x.reshape(-1, in_dim).astype(jnp.float32)
    n = x2d.shape[0]

    # Generation-aware defaults: v5e/v6e have 128 MiB VMEM (bigger tiles &
    # limit); v7x has 64 MiB per TC and 2 TCs (cap limit, keep row tile 256).
    kind = _tpu_kind()
    if "v7" in kind:
        vmem_limit = 48 * 1024 * 1024
        default_row_tile = 256
    elif "v6" in kind or "v5" in kind:
        vmem_limit = 80 * 1024 * 1024
        default_row_tile = 512 if n >= 4096 else 256
    else:
        vmem_limit = 48 * 1024 * 1024
        default_row_tile = 256

    # Row tiling: multiple of 16 (bf16 sublane tile); clamp/pad, never assert.
    sub = 16 if jnp.dtype(matmul_dtype).itemsize <= 2 else 8
    if row_tile is None:
        row_tile = default_row_tile
    row_tile = max(sub, min(_round_up(int(row_tile), sub), _round_up(n, sub)))
    n_pad = _round_up(n, row_tile)
    if n_pad != n:
        x2d = jnp.pad(x2d, ((0, n_pad - n), (0, 0)))

    # Harmonic-ladder check (freqs[k] == (k+1)*base, the module default) so the
    # in-kernel recurrence is valid; fall back to direct cos/sin otherwise.
    if harmonic_recurrence is None:
        try:
            f_np = np.asarray(freqs, dtype=np.float64).reshape(-1)
            harmonic_recurrence = bool(
                f_np.size == grid_size
                and np.allclose(f_np, np.arange(1, grid_size + 1) * f_np[0],
                                rtol=1e-5, atol=1e-6))
        except Exception:   # traced/abstract freqs -> safe fallback
            harmonic_recurrence = False

    # Fused weight: rows ordered [cos: g*D+i | sin: g*D+i], zero-padded on O.
    w_cos = jnp.transpose(cos_amps, (2, 1, 0)).reshape(grid_size * in_dim, out_dim)
    w_sin = jnp.transpose(sin_amps, (2, 1, 0)).reshape(grid_size * in_dim, out_dim)
    w = jnp.concatenate([w_cos, w_sin], axis=0)
    w = jnp.pad(w, ((0, 0), (0, o_pad - out_dim))).astype(matmul_dtype)

    # bias / gamma / beta collapsed into one (3, O_pad) operand.
    params = jnp.stack([bias, gamma, beta]).astype(jnp.float32)
    params = jnp.pad(params, ((0, 0), (0, o_pad - out_dim)))
    freqs1d = freqs.reshape(-1).astype(jnp.float32)

    kernel = functools.partial(
        _fkan_kernel, grid_size=grid_size, out_dim=out_dim, eps=eps,
        use_recurrence=harmonic_recurrence, matmul_dtype=matmul_dtype)

    # Advisory cost estimate.
    n_transc = 1 if harmonic_recurrence else grid_size
    flops = int(2 * n_pad * k_dim * o_pad + 8 * n_pad * in_dim * grid_size
                + 10 * n_pad * o_pad)
    transcendentals = int(2 * n_pad * in_dim * n_transc)
    bytes_accessed = int(4 * n_pad * in_dim
                         + jnp.dtype(matmul_dtype).itemsize * k_dim * o_pad
                         + 4 * 3 * o_pad + 4 * grid_size
                         + jnp.dtype(out_dtype).itemsize * n_pad * o_pad)

    out_padded = pl.pallas_call(
        kernel,
        out_shape=jax.ShapeDtypeStruct((n_pad, o_pad), out_dtype),
        grid_spec=pltpu.PrefetchScalarGridSpec(
            num_scalar_prefetch=0,
            grid=(n_pad // row_tile,),
            in_specs=[
                pl.BlockSpec(memory_space=pltpu.MemorySpace.SMEM),    # freqs
                pl.BlockSpec((row_tile, in_dim), lambda i: (i, 0)),   # x tile
                pl.BlockSpec((k_dim, o_pad), lambda i: (0, 0)),       # fused W
                pl.BlockSpec((3, o_pad), lambda i: (0, 0)),           # bias/gamma/beta
            ],
            out_specs=pl.BlockSpec((row_tile, o_pad), lambda i: (i, 0)),
        ),
        compiler_params=pltpu.CompilerParams(
            dimension_semantics=("parallel",),
            vmem_limit_bytes=vmem_limit),
        cost_estimate=pl.CostEstimate(
            flops=flops, transcendentals=transcendentals,
            bytes_accessed=bytes_accessed),
    )(freqs1d, x2d, w, params)

    return out_padded[:n, :out_dim]


def fourier_kan_reference(x, cos_amps, sin_amps, bias, freqs, gamma, beta,
                          eps=1e-5):
    """Pure-JAX reference mirroring the PyTorch forward exactly."""
    in_dim = cos_amps.shape[1]
    x2d = x.reshape(-1, in_dim).astype(jnp.float32)
    x_expanded = x2d[:, None, :, None]                        # (N, 1, D, 1)
    f = freqs.reshape(1, 1, 1, -1)                            # (1, 1, 1, G)
    phases = f * x_expanded                                   # (N, 1, D, G)
    out = jnp.sum(jnp.cos(phases) * cos_amps[None], axis=(-2, -1))
    out = out + jnp.sum(jnp.sin(phases) * sin_amps[None], axis=(-2, -1))
    out = out + bias[None, :]
    mean = jnp.mean(out, axis=-1, keepdims=True)
    var = jnp.mean((out - mean) ** 2, axis=-1, keepdims=True)
    out = (out - mean) / jnp.sqrt(var + eps)
    return out * gamma[None, :] + beta[None, :]


if __name__ == "__main__":
    # Small, deterministic configuration (matches the module defaults).
    batch, seq = 2, 8
    input_dim, output_dim, grid_size = 16, 32, 8
    init_freq_scale = 1.0

    key = jax.random.PRNGKey(0)
    k_x, k_cos, k_sin = jax.random.split(key, 3)

    # Parameter init (smooth_initialization=False, learnable_freq_scale='off').
    coef_norm = jnp.sqrt(jnp.float32(input_dim)) * jnp.sqrt(jnp.float32(grid_size))
    cos_amps = jax.random.normal(k_cos, (output_dim, input_dim, grid_size),
                                 jnp.float32) / coef_norm
    sin_amps = jax.random.normal(k_sin, (output_dim, input_dim, grid_size),
                                 jnp.float32) / coef_norm
    bias = jnp.zeros((output_dim,), jnp.float32)
    freqs = jnp.arange(1, grid_size + 1, dtype=jnp.float32) * init_freq_scale
    gamma = jnp.ones((output_dim,), jnp.float32)
    beta = jnp.zeros((output_dim,), jnp.float32)

    x = jax.random.normal(k_x, (batch, seq, input_dim), jnp.float32)

    ref = fourier_kan_reference(x, cos_amps, sin_amps, bias, freqs, gamma, beta)

    # Fast path: harmonic recurrence + bf16 MXU matmul (relaxed tolerance).
    out_fast = jax.block_until_ready(
        fourier_kan_forward(x, cos_amps, sin_amps, bias, freqs, gamma, beta))
    assert out_fast.shape == (batch * seq, output_dim)
    assert jnp.allclose(out_fast, ref, atol=3e-2, rtol=3e-2), (
        f"bf16 path max abs diff {jnp.max(jnp.abs(out_fast - ref))}")

    # Exact path: direct cos/sin + f32 matmul (tight tolerance).
    out_exact = jax.block_until_ready(
        fourier_kan_forward(x, cos_amps, sin_amps, bias, freqs, gamma, beta,
                            matmul_dtype=jnp.float32,
                            harmonic_recurrence=False))
    assert out_exact.shape == (batch * seq, output_dim)
    assert jnp.allclose(out_exact, ref, atol=1e-4, rtol=1e-4), (
        f"f32 path max abs diff {jnp.max(jnp.abs(out_exact - ref))}")

    print("KERNEL_OK")
</pallas_src>

<mosaic_0001>
module attributes {stable_mosaic.version = 11 : i64} {
  func.func @_fkan_kernel(%arg0: i32, %arg1: memref<8xf32, #tpu.memory_space<smem>>, %arg2: memref<16x16xf32, #tpu.memory_space<vmem>>, %arg3: memref<256x128xbf16, #tpu.memory_space<vmem>>, %arg4: memref<3x128xf32, #tpu.memory_space<vmem>>, %arg5: memref<16x128xf32, #tpu.memory_space<vmem>>) attributes {dimension_semantics = [#tpu.dimension_semantics<parallel>], iteration_bounds = array<i64: 1>, scalar_prefetch = 0 : i64, scratch_operands = 0 : i64, tpu.core_type = #tpu.core_type<tc>, window_params = [{transform_indices = @transform_0, window_bounds = array<i64: 8>}, {transform_indices = @transform_1, window_bounds = array<i64: 16, 16>}, {pipeline_mode = #tpu.pipeline_mode<synchronous>, transform_indices = @transform_2, window_bounds = array<i64: 256, 128>}, {pipeline_mode = #tpu.pipeline_mode<synchronous>, transform_indices = @transform_3, window_bounds = array<i64: 3, 128>}, {transform_indices = @transform_4, window_bounds = array<i64: 16, 128>}]} {
    %c0 = arith.constant 0 : index
    %c0_0 = arith.constant 0 : index
    %0 = vector.load %arg2[%c0, %c0_0] : memref<16x16xf32, #tpu.memory_space<vmem>>, vector<16x16xf32>
    %c0_1 = arith.constant 0 : index
    %1 = memref.load %arg1[%c0_1] : memref<8xf32, #tpu.memory_space<smem>>
    %2 = vector.broadcast %1 : f32 to vector<16x16xf32>
    %3 = arith.mulf %2, %0 : vector<16x16xf32>
    %4 = math.cos %3 : vector<16x16xf32>
    %5 = vector.broadcast %1 : f32 to vector<16x16xf32>
    %6 = arith.mulf %5, %0 : vector<16x16xf32>
    %7 = math.sin %6 : vector<16x16xf32>
    %8 = arith.truncf %4 : vector<16x16xf32> to vector<16x16xbf16>
    %9 = arith.truncf %7 : vector<16x16xf32> to vector<16x16xbf16>
    %10 = arith.mulf %4, %4 : vector<16x16xf32>
    %11 = arith.mulf %7, %7 : vector<16x16xf32>
    %12 = arith.subf %10, %11 : vector<16x16xf32>
    %13 = arith.mulf %7, %4 : vector<16x16xf32>
    %14 = arith.mulf %4, %7 : vector<16x16xf32>
    %15 = arith.addf %13, %14 : vector<16x16xf32>
    %16 = arith.truncf %12 : vector<16x16xf32> to vector<16x16xbf16>
    %17 = arith.truncf %15 : vector<16x16xf32> to vector<16x16xbf16>
    %18 = arith.mulf %12, %4 : vector<16x16xf32>
    %19 = arith.mulf %15, %7 : vector<16x16xf32>
    %20 = arith.subf %18, %19 : vector<16x16xf32>
    %21 = arith.mulf %15, %4 : vector<16x16xf32>
    %22 = arith.mulf %12, %7 : vector<16x16xf32>
    %23 = arith.addf %21, %22 : vector<16x16xf32>
    %24 = arith.truncf %20 : vector<16x16xf32> to vector<16x16xbf16>
    %25 = arith.truncf %23 : vector<16x16xf32> to vector<16x16xbf16>
    %26 = arith.mulf %20, %4 : vector<16x16xf32>
    %27 = arith.mulf %23, %7 : vector<16x16xf32>
    %28 = arith.subf %26, %27 : vector<16x16xf32>
    %29 = arith.mulf %23, %4 : vector<16x16xf32>
    %30 = arith.mulf %20, %7 : vector<16x16xf32>
    %31 = arith.addf %29, %30 : vector<16x16xf32>
    %32 = arith.truncf %28 : vector<16x16xf32> to vector<16x16xbf16>
    %33 = arith.truncf %31 : vector<16x16xf32> to vector<16x16xbf16>
    %34 = arith.mulf %28, %4 : vector<16x16xf32>
    %35 = arith.mulf %31, %7 : vector<16x16xf32>
    %36 = arith.subf %34, %35 : vector<16x16xf32>
    %37 = arith.mulf %31, %4 : vector<16x16xf32>
    %38 = arith.mulf %28, %7 : vector<16x16xf32>
    %39 = arith.addf %37, %38 : vector<16x16xf32>
    %40 = arith.truncf %36 : vector<16x16xf32> to vector<16x16xbf16>
    %41 = arith.truncf %39 : vector<16x16xf32> to vector<16x16xbf16>
    %42 = arith.mulf %36, %4 : vector<16x16xf32>
    %43 = arith.mulf %39, %7 : vector<16x16xf32>
    %44 = arith.subf %42, %43 : vector<16x16xf32>
    %45 = arith.mulf %39, %4 : vector<16x16xf32>
    %46 = arith.mulf %36, %7 : vector<16x16xf32>
    %47 = arith.addf %45, %46 : vector<16x16xf32>
    %48 = arith.truncf %44 : vector<16x16xf32> to vector<16x16xbf16>
    %49 = arith.truncf %47 : vector<16x16xf32> to vector<16x16xbf16>
    %50 = arith.mulf %44, %4 : vector<16x16xf32>
    %51 = arith.mulf %47, %7 : vector<16x16xf32>
    %52 = arith.subf %50, %51 : vector<16x16xf32>
    %53 = arith.mulf %47, %4 : vector<16x16xf32>
    %54 = arith.mulf %44, %7 : vector<16x16xf32>
    %55 = arith.addf %53, %54 : vector<16x16xf32>
    %56 = arith.truncf %52 : vector<16x16xf32> to vector<16x16xbf16>
    %57 = arith.truncf %55 : vector<16x16xf32> to vector<16x16xbf16>
    %58 = arith.mulf %52, %4 : vector<16x16xf32>
    %59 = arith.mulf %55, %7 : vector<16x16xf32>
    %60 = arith.subf %58, %59 : vector<16x16xf32>
    %61 = arith.mulf %55, %4 : vector<16x16xf32>
    %62 = arith.mulf %52, %7 : vector<16x16xf32>
    %63 = arith.addf %61, %62 : vector<16x16xf32>
    %64 = arith.truncf %60 : vector<16x16xf32> to vector<16x16xbf16>
    %65 = arith.truncf %63 : vector<16x16xf32> to vector<16x16xbf16>
    %66 = tpu.concatenate %8, %16, %24, %32, %40, %48, %56, %64, %9, %17, %25, %33, %41, %49, %57, %65 in 1 : vector<16x16xbf16>, vector<16x16xbf16>, vector<16x16xbf16>, vector<16x16xbf16>, vector<16x16xbf16>, vector<16x16xbf16>, vector<16x16xbf16>, vector<16x16xbf16>, vector<16x16xbf16>, vector<16x16xbf16>, vector<16x16xbf16>, vector<16x16xbf16>, vector<16x16xbf16>, vector<16x16xbf16>, vector<16x16xbf16>, vector<16x16xbf16> -> vector<16x256xbf16>
    %c0_2 = arith.constant 0 : index
    %c0_3 = arith.constant 0 : index
    %67 = vector.load %arg3[%c0_2, %c0_3] : memref<256x128xbf16, #tpu.memory_space<vmem>>, vector<256x128xbf16>
    %cst = arith.constant dense<0.000000e+00> : vector<16x128xf32>
    %68 = tpu.matmul %66, %67, %cst {dimension_numbers = #tpu.dot_dimension_numbers<[1], [0], [0], [1], [0, 0, 1, 1], [], []>} : vector<16x256xbf16>, vector<256x128xbf16>, vector<16x128xf32> -> vector<16x128xf32>
    %c0_4 = arith.constant 0 : index
    %c0_5 = arith.constant 0 : index
    %69 = vector.load %arg4[%c0_4, %c0_5] : memref<3x128xf32, #tpu.memory_space<vmem>>, vector<1x128xf32>
    %70 = vector.broadcast %69 : vector<1x128xf32> to vector<16x128xf32>
    %71 = arith.addf %68, %70 : vector<16x128xf32>
    %72 = tpu.iota {dimensions = array<i32: 1>} : vector<16x128xi32>
    %c32_i32 = arith.constant 32 : i32
    %73 = vector.broadcast %c32_i32 : i32 to vector<16x128xi32>
    %74 = arith.cmpi slt, %72, %73 : vector<16x128xi32>
    %cst_6 = arith.constant 0.000000e+00 : f32
    %75 = vector.broadcast %cst_6 : f32 to vector<16x128xf32>
    %76 = arith.select %74, %71, %75 : vector<16x128xi1>, vector<16x128xf32>
    %cst_7 = arith.constant dense<0.000000e+00> : vector<16xf32>
    %77 = vector.multi_reduction <add>, %76, %cst_7 [1] : vector<16x128xf32> to vector<16xf32>
    %78 = vector.shape_cast %77 : vector<16xf32> to vector<16x1xf32>
    %cst_8 = arith.constant 3.125000e-02 : f32
    %79 = vector.broadcast %cst_8 : f32 to vector<16x1xf32>
    %80 = arith.mulf %78, %79 : vector<16x1xf32>
    %81 = vector.broadcast %80 : vector<16x1xf32> to vector<16x128xf32>
    %82 = arith.subf %76, %81 : vector<16x128xf32>
    %cst_9 = arith.constant 0.000000e+00 : f32
    %83 = vector.broadcast %cst_9 : f32 to vector<16x128xf32>
    %84 = arith.select %74, %82, %83 : vector<16x128xi1>, vector<16x128xf32>
    %85 = arith.mulf %84, %84 : vector<16x128xf32>
    %cst_10 = arith.constant dense<0.000000e+00> : vector<16xf32>
    %86 = vector.multi_reduction <add>, %85, %cst_10 [1] : vector<16x128xf32> to vector<16xf32>
    %87 = vector.shape_cast %86 : vector<16xf32> to vector<16x1xf32>
    %cst_11 = arith.constant 3.125000e-02 : f32
    %88 = vector.broadcast %cst_11 : f32 to vector<16x1xf32>
    %89 = arith.mulf %87, %88 : vector<16x1xf32>
    %cst_12 = arith.constant 9.99999974E-6 : f32
    %90 = vector.broadcast %cst_12 : f32 to vector<16x1xf32>
    %91 = arith.addf %89, %90 : vector<16x1xf32>
    %92 = math.rsqrt %91 : vector<16x1xf32>
    %93 = vector.broadcast %92 : vector<16x1xf32> to vector<16x128xf32>
    %94 = arith.mulf %84, %93 : vector<16x128xf32>
    %c1 = arith.constant 1 : index
    %c0_13 = arith.constant 0 : index
    %95 = vector.load %arg4[%c1, %c0_13] : memref<3x128xf32, #tpu.memory_space<vmem>>, vector<1x128xf32>
    %96 = vector.broadcast %95 : vector<1x128xf32> to vector<16x128xf32>
    %97 = arith.mulf %94, %96 : vector<16x128xf32>
    %c2 = arith.constant 2 : index
    %c0_14 = arith.constant 0 : index
    %98 = vector.load %arg4[%c2, %c0_14] : memref<3x128xf32, #tpu.memory_space<vmem>>, vector<1x128xf32>
    %99 = vector.broadcast %98 : vector<1x128xf32> to vector<16x128xf32>
    %100 = arith.addf %97, %99 : vector<16x128xf32>
    %c0_15 = arith.constant 0 : index
    %c0_16 = arith.constant 0 : index
    %101 = vector.load %arg5[%c0_15, %c0_16] : memref<16x128xf32, #tpu.memory_space<vmem>>, vector<16x128xf32>
    tpu.vector_store %arg5[%c0_15, %c0_16], %100 {strides = array<i32>} : memref<16x128xf32, #tpu.memory_space<vmem>>, vector<16x128xf32>,
    return
  }
  func.func @transform_0(%arg0: i32) -> i32 {
    %c0_i32 = arith.constant 0 : i32
    %c0_i32_0 = arith.constant 0 : i32
    return %c0_i32 : i32
  }
  func.func @transform_1(%arg0: i32) -> (i32, i32) {
    %c0_i32 = arith.constant 0 : i32
    %c0_i32_0 = arith.constant 0 : i32
    return %arg0, %c0_i32 : i32, i32
  }
  func.func @transform_2(%arg0: i32) -> (i32, i32) {
    %c0_i32 = arith.constant 0 : i32
    %c0_i32_0 = arith.constant 0 : i32
    %c0_i32_1 = arith.constant 0 : i32
    return %c0_i32, %c0_i32_0 : i32, i32
  }
  func.func @transform_3(%arg0: i32) -> (i32, i32) {
    %c0_i32 = arith.constant 0 : i32
    %c0_i32_0 = arith.constant 0 : i32
    %c0_i32_1 = arith.constant 0 : i32
    return %c0_i32, %c0_i32_0 : i32, i32
  }
  func.func @transform_4(%arg0: i32) -> (i32, i32) {
    %c0_i32 = arith.constant 0 : i32
    %c0_i32_0 = arith.constant 0 : i32
    return %arg0, %c0_i32 : i32, i32
  }
}

</mosaic_0001>

<llo_original>
// kernel: tpu_custom_call.1
$region0: #{tpu_custom_call.1}
  #allocation0 [shape = 'u32[]', space=smem, size = 0x4, offset = 0x4, fixed_abs, tag = 'smem constant byte address 0x4 - core index']
  #allocation1 [shape = 'u32[144,128]{1,0:T(1,128)}', space=vmem, size = 0x12000, scoped, tag = 'internal scratch']
  %s0 = inlined_call_operand.hbm [shape: f32[8], index: 0, kind: input, shape index: {}]
  %s1 = inlined_call_operand.hbm [shape: f32[16,16], index: 1, kind: input, shape index: {}]
  %s2 = inlined_call_operand.hbm [shape: bf16[256,128], index: 2, kind: input, shape index: {}]
  %s3 = inlined_call_operand.vmem [shape: f32[3,128], index: 3, kind: input, shape index: {}]
  %s4 = inlined_call_operand.hbm [shape: f32[16,128], index: 4, kind: output, shape index: {}]
  %s5 = sld [smem:[#allocation0]]
  $region38: #{tpu_custom_call.1} parent=0
    _
  %s7 = ssub.s32 1, %s5
  %s8 = scalar_select 0, %s7, %s5
  $region1: #{tpu_custom_call.1} parent=0
    #allocation2 [shape = 'u8[512]{0}', space=smem, size = 0x200, scoped, tag = 'input window, operand 0, single buffered']
    #allocation3 [shape = 's32[1]{0}', space=sflag, size = 0x4, scoped, tag = 'scoped memory for tpu_custom_call.1']
    #allocation4 [shape = 's32[1]{0}', space=sflag, size = 0x4, scoped, tag = 'scoped memory for tpu_custom_call.1']
    #allocation5 [shape = 's32[1]{0}', space=sflag, size = 0x4, scoped, tag = 'scoped memory for tpu_custom_call.1']
    #allocation6 [shape = 'u8[8192]{0}', space=vmem, size = 0x2000, scoped, tag = 'input window, operand 1, single buffered']
    #allocation7 [shape = 'u8[65536]{0}', space=vmem, size = 0x10000, scoped, tag = 'input window, operand 2, single buffered']
    #allocation8 [shape = 's32[1]{0}', space=sflag, size = 0x4, scoped, tag = 'scoped memory for tpu_custom_call.1']
    #allocation9 [shape = 'u8[8192]{0}', space=vmem, size = 0x2000, scoped, tag = 'output window, operand 0, single buffered']
    %9 = vsyncpa [#allocation5], 0
    %10 = vsyncpa [#allocation3], 0
    %11 = vsyncpa [#allocation8], 0
    %12 = vsyncpa [#allocation4], 0
    // Predicated region
    $region2: #{tpu_custom_call.1} parent=1 // pred_check
      _
    $region3: #{tpu_custom_call.1} parent=1 // pred_check_branch
      %14 = sbr.rel (0) target = $region5
    $region4: #{tpu_custom_call.1} parent=1 // pred_region
      %s16 = ssub.s32 16, 16
      %17 = vsyncadd [#allocation5], %s16
      %20 = dma.hbm_to_smem %s0, 16, [#allocation2], [#allocation5]
    $region5: #{tpu_custom_call.1} parent=1 // pred_fallthru
      _
    // Predicated region
    $region6: #{tpu_custom_call.1} parent=1 // pred_check
      _
    $region7: #{tpu_custom_call.1} parent=1 // pred_check_branch
      %22 = sbr.rel (0) target = $region9
    $region8: #{tpu_custom_call.1} parent=1 // pred_region
      %s24 = ssub.s32 256, 256
      %25 = vsyncadd [#allocation3], %s24
      %s26 = sshll.u32 [#allocation6], 4
      %s27 = int_to_ptr.vmem [resolvable:$true] %s26
      %32 = dma.hbm_to_vmem [thread:$0]  %s1, 256, %s27, [#allocation3], 128, 128, 8
    $region9: #{tpu_custom_call.1} parent=1 // pred_fallthru
      _
    // Predicated region
    $region10: #{tpu_custom_call.1} parent=1 // pred_check
      _
    $region11: #{tpu_custom_call.1} parent=1 // pred_check_branch
      %34 = sbr.rel (0) target = $region13
    $region12: #{tpu_custom_call.1} parent=1 // pred_region
      %s36 = ssub.s32 2048, 2048
      %37 = vsyncadd [#allocation8], %s36
      %s38 = sshll.u32 [#allocation7], 4
      %s39 = int_to_ptr.vmem [resolvable:$true] %s38
      %44 = dma.hbm_to_vmem [thread:$0]  %s2, 2048, %s39, [#allocation8], 64, 64, 4
    $region13: #{tpu_custom_call.1} parent=1 // pred_fallthru
      _
    // Predicated region
    $region14: #{tpu_custom_call.1} parent=1 // pred_check
      _
    $region15: #{tpu_custom_call.1} parent=1 // pred_check_branch
      %46 = sbr.rel (0) target = $region17
    $region16: #{tpu_custom_call.1} parent=1 // pred_region
      _
    $region17: #{tpu_custom_call.1} parent=1 // pred_fallthru
      _
    // Predicated region
    $region18: #{tpu_custom_call.1} parent=1 // pred_check
      _
    $region19: #{tpu_custom_call.1} parent=1 // pred_check_branch
      %48 = sbr.rel (0) target = $region21
    $region20: #{tpu_custom_call.1} parent=1 // pred_region
      %49 = dma.done [#allocation5], 16
    $region21: #{tpu_custom_call.1} parent=1 // pred_fallthru
      _
    // Predicated region
    $region22: #{tpu_custom_call.1} parent=1 // pred_check
      _
    $region23: #{tpu_custom_call.1} parent=1 // pred_check_branch
      %51 = sbr.rel (0) target = $region25
    $region24: #{tpu_custom_call.1} parent=1 // pred_region
      %52 = dma.done [#allocation3], 256
    $region25: #{tpu_custom_call.1} parent=1 // pred_fallthru
      _
    // Predicated region
    $region26: #{tpu_custom_call.1} parent=1 // pred_check
      _
    $region27: #{tpu_custom_call.1} parent=1 // pred_check_branch
      %54 = sbr.rel (0) target = $region29
    $region28: #{tpu_custom_call.1} parent=1 // pred_region
      %55 = dma.done [#allocation8], 2048
    $region29: #{tpu_custom_call.1} parent=1 // pred_fallthru
      _
    %56 = sfence
    %v58 = vld [vmem:[#allocation6] sm:$0xff]
    %v59 = vld [vmem:[#allocation6 + $0x8] sm:$0xff]
    %s60 = sld [smem:[#allocation2]]
    %v61 = vstv %s60
    %v62 = vmul.f32 %v61, %v58
    %v63 = vmul.f32 %v61, %v59
    %v64 = vand.u32 2147483647, %v62
    %vm65 = vcmp.le.f32.partialorder %v64, 0.7853982
    %vm66 = vcmp.lt.s32.totalorder %v62, 0
    %v67 = vand.u32 %v62, 2139095040
    %v68 = vshrl.u32 %v67, 23
    %v69 = vsub.s32 %v68, 127
    %v70 = vand.u32 2147483647, %v62
    %v71 = vand.u32 %v70, 8388607
    %v72 = vor.u32 %v71, 8388608
    %v73 = vsub.s32 0, %v72
    %v74 = vadd.s32 %v69, 1
    %vm75 = vcmp.gt.s32.totalorder %v74, 0
    %v76 = vsel %vm75, %v74, 0
    %v77 = vshrl.u32 %v76, 5
    %v78 = vand.u32 %v76, 31
    %v79 = vsub.s32 32, %v78
    %v80 = vshrl.u32 683565275, %v79
    %v81 = vshll.u32 683565275, %v78
    %v82 = vshrl.u32 2475754826, %v79
    %v83 = vor.u32 %v81, %v82
    %v84 = vshll.u32 2475754826, %v78
    %v85 = vshrl.u32 2131351028, %v79
    %v86 = vor.u32 %v84, %v85
    %v87 = vshll.u32 2131351028, %v78
    %v88 = vshrl.u32 2102212464, %v79
    %v89 = vor.u32 %v87, %v88
    %v90 = vshll.u32 2102212464, %v78
    %v91 = vshrl.u32 920167782, %v79
    %v92 = vor.u32 %v90, %v91
    %v93 = vshll.u32 920167782, %v78
    %v94 = vshrl.u32 1326507024, %v79
    %v95 = vor.u32 %v93, %v94
    %vm96 = vcmp.lt.s32.totalorder %v77, 1
    %vm97 = vcmp.lt.s32.totalorder %v77, 2
    %vm98 = vcmp.lt.s32.totalorder %v77, 3
    %vm99 = vcmp.lt.s32.totalorder %v77, 4
    %v100 = vsel %vm96, %v80, %v83
    %v101 = vsel %vm99, %v89, 2102212464
    %v102 = vsel %vm98, %v86, %v101
    %v103 = vsel %vm97, %v100, %v102
    %v104 = vsel %vm96, %v83, %v86
    %v105 = vsel %vm99, %v92, 920167782
    %v106 = vsel %vm98, %v89, %v105
    %v107 = vsel %vm97, %v104, %v106
    %v108 = vsel %vm96, %v86, %v89
    %v109 = vsel %vm99, %v95, 1326507024
    %v110 = vsel %vm98, %v92, %v109
    %v111 = vsel %vm97, %v108, %v110
    %v112 = vshll.u32 %v72, 8
    %v113 = vmul.u32.u64.compose %v112, %v111
    %v114 = vextract.low.u32 %v113
    %v115 = vextract.high.u32 %v113
    %v116 = vmul.u32.u64.compose %v112, %v107
    %v117 = vextract.low.u32 %v116
    %v118 = vextract.high.u32 %v116
    %v119 = vmul.u32 %v112, %v103
    %v120 = vadd.s32 %v115, %v117
    %vm121 = vc.u32 %v115, %v117
    %v122 = vadd.s32 %v118, 1
    %v123 = vsel %vm121, %v122, %v118
    %v124 = vadd.s32 %v119, %v123
    %v125 = vadd.s32 %v124, 536870912
    %v126 = vshrl.u32 %v125, 30
    %v127 = vshll.u32 %v126, 30
    %v128 = vsub.s32 %v124, %v127
    %vm129 = vcmp.lt.s32.totalorder %v128, 0
    %v130 = vsub.s32 0, %v128
    %v131 = vsel %vm129, %v130, %v128
    %v132 = vclz %v131
    %v133 = vsub.s32 %v132, 2
    %vm134 = vcmp.gt.s32.totalorder 0, %v133
    %v135 = vsel %vm134, 0, %v133
    %v136 = vsub.s32 32, %v135
    %v137 = vshll.u32 %v128, %v135
    %v138 = vshrl.u32 %v120, %v136
    %v139 = vor.u32 %v137, %v138
    %v140 = vsub.s32 4294967266, %v135
    %v141 = vadd.s32 %v140, 127
    %v142 = vshll.u32 %v141, 23
    %v143 = vor.u32 4788187, %v142
    %v144 = vand.u32 2147483647, %v143
    %v146 = vcvt.s32.f32 %v139
    %v147 = vmul.f32 %v146, %v144
    %v148 = vxor.u32 %v147, 2147483648
    %v149 = vsel %vm66, %v148, %v147
    %v150 = vsub.s32 4, %v126
    %v151 = vsel %vm66, %v150, %v126
    %v152 = vsel %vm65, %v62, %v149
    %v153 = vsel %vm65, 0, %v151
    %v154 = vcosq.f32.pop %v152
    %v155 = vsinq.f32.pop %v152
    %vm156 = vweird.f32 %v62
    %v157 = vand.u32 %v153, 3
    %vm158 = vcmp.lt.s32.totalorder %v157, 2
    %vm159 = vcmp.eq.s32.totalorder %v157, 0
    %v160 = vxor.u32 %v155, 2147483648
    %v161 = vsel %vm159, %v154, %v160
    %vm162 = vcmp.eq.s32.totalorder %v157, 2
    %v163 = vxor.u32 %v154, 2147483648
    %v164 = vsel %vm162, %v163, %v155
    %v165 = vsel %vm158, %v161, %v164
    %v166 = vsel %vm156, nan, %v165
    %v167 = vand.u32 2147483647, %v63
    %vm168 = vcmp.le.f32.partialorder %v167, 0.7853982
    %vm169 = vcmp.lt.s32.totalorder %v63, 0
    %v170 = vand.u32 %v63, 2139095040
    %v171 = vshrl.u32 %v170, 23
    %v172 = vsub.s32 %v171, 127
    %v173 = vand.u32 2147483647, %v63
    %v174 = vand.u32 %v173, 8388607
    %v175 = vor.u32 %v174, 8388608
    %v176 = vsub.s32 0, %v175
    %v177 = vadd.s32 %v172, 1
    %vm178 = vcmp.gt.s32.totalorder %v177, 0
    %v179 = vsel %vm178, %v177, 0
    %v180 = vshrl.u32 %v179, 5
    %v181 = vand.u32 %v179, 31
    %v182 = vsub.s32 32, %v181
    %v183 = vshrl.u32 683565275, %v182
    %v184 = vshll.u32 683565275, %v181
    %v185 = vshrl.u32 2475754826, %v182
    %v186 = vor.u32 %v184, %v185
    %v187 = vshll.u32 2475754826, %v181
    %v188 = vshrl.u32 2131351028, %v182
    %v189 = vor.u32 %v187, %v188
    %v190 = vshll.u32 2131351028, %v181
    %v191 = vshrl.u32 2102212464, %v182
    %v192 = vor.u32 %v190, %v191
    %v193 = vshll.u32 2102212464, %v181
    %v194 = vshrl.u32 920167782, %v182
    %v195 = vor.u32 %v193, %v194
    %v196 = vshll.u32 920167782, %v181
    %v197 = vshrl.u32 1326507024, %v182
    %v198 = vor.u32 %v196, %v197
    %vm199 = vcmp.lt.s32.totalorder %v180, 1
    %vm200 = vcmp.lt.s32.totalorder %v180, 2
    %vm201 = vcmp.lt.s32.totalorder %v180, 3
    %vm202 = vcmp.lt.s32.totalorder %v180, 4
    %v203 = vsel %vm199, %v183, %v186
    %v204 = vsel %vm202, %v192, 2102212464
    %v205 = vsel %vm201, %v189, %v204
    %v206 = vsel %vm200, %v203, %v205
    %v207 = vsel %vm199, %v186, %v189
    %v208 = vsel %vm202, %v195, 920167782
    %v209 = vsel %vm201, %v192, %v208
    %v210 = vsel %vm200, %v207, %v209
    %v211 = vsel %vm199, %v189, %v192
    %v212 = vsel %vm202, %v198, 1326507024
    %v213 = vsel %vm201, %v195, %v212
    %v214 = vsel %vm200, %v211, %v213
    %v215 = vshll.u32 %v175, 8
    %v216 = vmul.u32.u64.compose %v215, %v214
    %v217 = vextract.low.u32 %v216
    %v218 = vextract.high.u32 %v216
    %v219 = vmul.u32.u64.compose %v215, %v210
    %v220 = vextract.low.u32 %v219
    %v221 = vextract.high.u32 %v219
    %v222 = vmul.u32 %v215, %v206
    %v223 = vadd.s32 %v218, %v220
    %vm224 = vc.u32 %v218, %v220
    %v225 = vadd.s32 %v221, 1
    %v226 = vsel %vm224, %v225, %v221
    %v227 = vadd.s32 %v222, %v226
    %v228 = vadd.s32 %v227, 536870912
    %v229 = vshrl.u32 %v228, 30
    %v230 = vshll.u32 %v229, 30
    %v231 = vsub.s32 %v227, %v230
    %vm232 = vcmp.lt.s32.totalorder %v231, 0
    %v233 = vsub.s32 0, %v231
    %v234 = vsel %vm232, %v233, %v231
    %v235 = vclz %v234
    %v236 = vsub.s32 %v235, 2
    %vm237 = vcmp.gt.s32.totalorder 0, %v236
    %v238 = vsel %vm237, 0, %v236
    %v239 = vsub.s32 32, %v238
    %v240 = vshll.u32 %v231, %v238
    %v241 = vshrl.u32 %v223, %v239
    %v242 = vor.u32 %v240, %v241
    %v243 = vsub.s32 4294967266, %v238
    %v244 = vadd.s32 %v243, 127
    %v245 = vshll.u32 %v244, 23
    %v246 = vor.u32 4788187, %v245
    %v247 = vand.u32 2147483647, %v246
    %v249 = vcvt.s32.f32 %v242
    %v250 = vmul.f32 %v249, %v247
    %v251 = vxor.u32 %v250, 2147483648
    %v252 = vsel %vm169, %v251, %v250
    %v253 = vsub.s32 4, %v229
    %v254 = vsel %vm169, %v253, %v229
    %v255 = vsel %vm168, %v63, %v252
    %v256 = vsel %vm168, 0, %v254
    %v257 = vcosq.f32.pop %v255
    %v258 = vsinq.f32.pop %v255
    %vm259 = vweird.f32 %v63
    %v260 = vand.u32 %v256, 3
    %vm261 = vcmp.lt.s32.totalorder %v260, 2
    %vm262 = vcmp.eq.s32.totalorder %v260, 0
    %v263 = vxor.u32 %v258, 2147483648
    %v264 = vsel %vm262, %v257, %v263
    %vm265 = vcmp.eq.s32.totalorder %v260, 2
    %v266 = vxor.u32 %v257, 2147483648
    %v267 = vsel %vm265, %v266, %v258
    %v268 = vsel %vm261, %v264, %v267
    %v269 = vsel %vm259, nan, %v268
    %v270 = vand.u32 2147483647, %v62
    %vm271 = vcmp.le.f32.partialorder %v270, 0.7853982
    %vm272 = vcmp.lt.s32.totalorder %v62, 0
    %v273 = vand.u32 %v62, 2139095040
    %v274 = vshrl.u32 %v273, 23
    %v275 = vsub.s32 %v274, 127
    %v276 = vand.u32 2147483647, %v62
    %v277 = vand.u32 %v276, 8388607
    %v278 = vor.u32 %v277, 8388608
    %v279 = vsub.s32 0, %v278
    %v280 = vadd.s32 %v275, 1
    %vm281 = vcmp.gt.s32.totalorder %v280, 0
    %v282 = vsel %vm281, %v280, 0
    %v283 = vshrl.u32 %v282, 5
    %v284 = vand.u32 %v282, 31
    %v285 = vsub.s32 32, %v284
    %v286 = vshrl.u32 683565275, %v285
    %v287 = vshll.u32 683565275, %v284
    %v288 = vshrl.u32 2475754826, %v285
    %v289 = vor.u32 %v287, %v288
    %v290 = vshll.u32 2475754826, %v284
    %v291 = vshrl.u32 2131351028, %v285
    %v292 = vor.u32 %v290, %v291
    %v293 = vshll.u32 2131351028, %v284
    %v294 = vshrl.u32 2102212464, %v285
    %v295 = vor.u32 %v293, %v294
    %v296 = vshll.u32 2102212464, %v284
    %v297 = vshrl.u32 920167782, %v285
    %v298 = vor.u32 %v296, %v297
    %v299 = vshll.u32 920167782, %v284
    %v300 = vshrl.u32 1326507024, %v285
    %v301 = vor.u32 %v299, %v300
    %vm302 = vcmp.lt.s32.totalorder %v283, 1
    %vm303 = vcmp.lt.s32.totalorder %v283, 2
    %vm304 = vcmp.lt.s32.totalorder %v283, 3
    %vm305 = vcmp.lt.s32.totalorder %v283, 4
    %v306 = vsel %vm302, %v286, %v289
    %v307 = vsel %vm305, %v295, 2102212464
    %v308 = vsel %vm304, %v292, %v307
    %v309 = vsel %vm303, %v306, %v308
    %v310 = vsel %vm302, %v289, %v292
    %v311 = vsel %vm305, %v298, 920167782
    %v312 = vsel %vm304, %v295, %v311
    %v313 = vsel %vm303, %v310, %v312
    %v314 = vsel %vm302, %v292, %v295
    %v315 = vsel %vm305, %v301, 1326507024
    %v316 = vsel %vm304, %v298, %v315
    %v317 = vsel %vm303, %v314, %v316
    %v318 = vshll.u32 %v278, 8
    %v319 = vmul.u32.u64.compose %v318, %v317
    %v320 = vextract.low.u32 %v319
    %v321 = vextract.high.u32 %v319
    %v322 = vmul.u32.u64.compose %v318, %v313
    %v323 = vextract.low.u32 %v322
    %v324 = vextract.high.u32 %v322
    %v325 = vmul.u32 %v318, %v309
    %v326 = vadd.s32 %v321, %v323
    %vm327 = vc.u32 %v321, %v323
    %v328 = vadd.s32 %v324, 1
    %v329 = vsel %vm327, %v328, %v324
    %v330 = vadd.s32 %v325, %v329
    %v331 = vadd.s32 %v330, 536870912
    %v332 = vshrl.u32 %v331, 30
    %v333 = vshll.u32 %v332, 30
    %v334 = vsub.s32 %v330, %v333
    %vm335 = vcmp.lt.s32.totalorder %v334, 0
    %v336 = vsub.s32 0, %v334
    %v337 = vsel %vm335, %v336, %v334
    %v338 = vclz %v337
    %v339 = vsub.s32 %v338, 2
    %vm340 = vcmp.gt.s32.totalorder 0, %v339
    %v341 = vsel %vm340, 0, %v339
    %v342 = vsub.s32 32, %v341
    %v343 = vshll.u32 %v334, %v341
    %v344 = vshrl.u32 %v326, %v342
    %v345 = vor.u32 %v343, %v344
    %v346 = vsub.s32 4294967266, %v341
    %v347 = vadd.s32 %v346, 127
    %v348 = vshll.u32 %v347, 23
    %v349 = vor.u32 4788187, %v348
    %v350 = vand.u32 2147483647, %v349
    %v352 = vcvt.s32.f32 %v345
    %v353 = vmul.f32 %v352, %v350
    %v354 = vxor.u32 %v353, 2147483648
    %v355 = vsel %vm272, %v354, %v353
    %v356 = vsub.s32 4, %v332
    %v357 = vsel %vm272, %v356, %v332
    %v358 = vsel %vm271, %v62, %v355
    %v359 = vsel %vm271, 0, %v357
    %v360 = vcosq.f32.pop %v358
    %v361 = vsinq.f32.pop %v358
    %vm362 = vweird.f32 %v62
    %v363 = vadd.s32 %v359, 3
    %v364 = vand.u32 %v363, 3
    %vm365 = vcmp.lt.s32.totalorder %v364, 2
    %vm366 = vcmp.eq.s32.totalorder %v364, 0
    %v367 = vxor.u32 %v361, 2147483648
    %v368 = vsel %vm366, %v360, %v367
    %vm369 = vcmp.eq.s32.totalorder %v364, 2
    %v370 = vxor.u32 %v360, 2147483648
    %v371 = vsel %vm369, %v370, %v361
    %v372 = vsel %vm365, %v368, %v371
    %v373 = vsel %vm362, nan, %v372
    %v374 = vand.u32 2147483647, %v63
    %vm375 = vcmp.le.f32.partialorder %v374, 0.7853982
    %vm376 = vcmp.lt.s32.totalorder %v63, 0
    %v377 = vand.u32 %v63, 2139095040
    %v378 = vshrl.u32 %v377, 23
    %v379 = vsub.s32 %v378, 127
    %v380 = vand.u32 2147483647, %v63
    %v381 = vand.u32 %v380, 8388607
    %v382 = vor.u32 %v381, 8388608
    %v383 = vsub.s32 0, %v382
    %v384 = vadd.s32 %v379, 1
    %vm385 = vcmp.gt.s32.totalorder %v384, 0
    %v386 = vsel %vm385, %v384, 0
    %v387 = vshrl.u32 %v386, 5
    %v388 = vand.u32 %v386, 31
    %v389 = vsub.s32 32, %v388
    %v390 = vshrl.u32 683565275, %v389
    %v391 = vshll.u32 683565275, %v388
    %v392 = vshrl.u32 2475754826, %v389
    %v393 = vor.u32 %v391, %v392
    %v394 = vshll.u32 2475754826, %v388
    %v395 = vshrl.u32 2131351028, %v389
    %v396 = vor.u32 %v394, %v395
    %v397 = vshll.u32 2131351028, %v388
    %v398 = vshrl.u32 2102212464, %v389
    %v399 = vor.u32 %v397, %v398
    %v400 = vshll.u32 2102212464, %v388
    %v401 = vshrl.u32 920167782, %v389
    %v402 = vor.u32 %v400, %v401
    %v403 = vshll.u32 920167782, %v388
    %v404 = vshrl.u32 1326507024, %v389
    %v405 = vor.u32 %v403, %v404
    %vm406 = vcmp.lt.s32.totalorder %v387, 1
    %vm407 = vcmp.lt.s32.totalorder %v387, 2
    %vm408 = vcmp.lt.s32.totalorder %v387, 3
    %vm409 = vcmp.lt.s32.totalorder %v387, 4
    %v410 = vsel %vm406, %v390, %v393
    %v411 = vsel %vm409, %v399, 2102212464
    %v412 = vsel %vm408, %v396, %v411
    %v413 = vsel %vm407, %v410, %v412
    %v414 = vsel %vm406, %v393, %v396
    %v415 = vsel %vm409, %v402, 920167782
    %v416 = vsel %vm408, %v399, %v415
    %v417 = vsel %vm407, %v414, %v416
    %v418 = vsel %vm406, %v396, %v399
    %v419 = vsel %vm409, %v405, 1326507024
    %v420 = vsel %vm408, %v402, %v419
    %v421 = vsel %vm407, %v418, %v420
    %v422 = vshll.u32 %v382, 8
    %v423 = vmul.u32.u64.compose %v422, %v421
    %v424 = vextract.low.u32 %v423
    %v425 = vextract.high.u32 %v423
    %v426 = vmul.u32.u64.compose %v422, %v417
    %v427 = vextract.low.u32 %v426
    %v428 = vextract.high.u32 %v426
    %v429 = vmul.u32 %v422, %v413
    %v430 = vadd.s32 %v425, %v427
    %vm431 = vc.u32 %v425, %v427
    %v432 = vadd.s32 %v428, 1
    %v433 = vsel %vm431, %v432, %v428
    %v434 = vadd.s32 %v429, %v433
    %v435 = vadd.s32 %v434, 536870912
    %v436 = vshrl.u32 %v435, 30
    %v437 = vshll.u32 %v436, 30
    %v438 = vsub.s32 %v434, %v437
    %vm439 = vcmp.lt.s32.totalorder %v438, 0
    %v440 = vsub.s32 0, %v438
    %v441 = vsel %vm439, %v440, %v438
    %v442 = vclz %v441
    %v443 = vsub.s32 %v442, 2
    %vm444 = vcmp.gt.s32.totalorder 0, %v443
    %v445 = vsel %vm444, 0, %v443
    %v446 = vsub.s32 32, %v445
    %v447 = vshll.u32 %v438, %v445
    %v448 = vshrl.u32 %v430, %v446
    %v449 = vor.u32 %v447, %v448
    %v450 = vsub.s32 4294967266, %v445
    %v451 = vadd.s32 %v450, 127
    %v452 = vshll.u32 %v451, 23
    %v453 = vor.u32 4788187, %v452
    %v454 = vand.u32 2147483647, %v453
    %v456 = vcvt.s32.f32 %v449
    %v457 = vmul.f32 %v456, %v454
    %v458 = vxor.u32 %v457, 2147483648
    %v459 = vsel %vm376, %v458, %v457
    %v460 = vsub.s32 4, %v436
    %v461 = vsel %vm376, %v460, %v436
    %v462 = vsel %vm375, %v63, %v459
    %v463 = vsel %vm375, 0, %v461
    %v464 = vcosq.f32.pop %v462
    %v465 = vsinq.f32.pop %v462
    %vm466 = vweird.f32 %v63
    %v467 = vadd.s32 %v463, 3
    %v468 = vand.u32 %v467, 3
    %vm469 = vcmp.lt.s32.totalorder %v468, 2
    %vm470 = vcmp.eq.s32.totalorder %v468, 0
    %v471 = vxor.u32 %v465, 2147483648
    %v472 = vsel %vm470, %v464, %v471
    %vm473 = vcmp.eq.s32.totalorder %v468, 2
    %v474 = vxor.u32 %v464, 2147483648
    %v475 = vsel %vm473, %v474, %v465
    %v476 = vsel %vm469, %v472, %v475
    %v477 = vsel %vm466, nan, %v476
    %v478 = vpack.c.bf16 %v269, %v166
    %v479 = vpack.c.bf16 %v477, %v373
    %v480 = vmul.f32 %v166, %v166
    %v481 = vmul.f32 %v269, %v269
    %v482 = vmul.f32 %v373, %v373
    %v483 = vmul.f32 %v477, %v477
    %v484 = vsub.f32 %v480, %v482
    %v485 = vsub.f32 %v481, %v483
    %v486 = vmul.f32 %v373, %v166
    %v487 = vmul.f32 %v477, %v269
    %v488 = vadd.f32 %v486, %v486
    %v489 = vadd.f32 %v487, %v487
    %v490 = vpack.c.bf16 %v485, %v484
    %v491 = vpack.c.bf16 %v489, %v488
    %v492 = vmul.f32 %v484, %v166
    %v493 = vmul.f32 %v485, %v269
    %v494 = vmul.f32 %v488, %v373
    %v495 = vmul.f32 %v489, %v477
    %v496 = vsub.f32 %v492, %v494
    %v497 = vsub.f32 %v493, %v495
    %v498 = vmul.f32 %v488, %v166
    %v499 = vmul.f32 %v489, %v269
    %v500 = vmul.f32 %v484, %v373
    %v501 = vmul.f32 %v485, %v477
    %v502 = vadd.f32 %v498, %v500
    %v503 = vadd.f32 %v499, %v501
    %v504 = vpack.c.bf16 %v497, %v496
    %v505 = vpack.c.bf16 %v503, %v502
    %v506 = vmul.f32 %v496, %v166
    %v507 = vmul.f32 %v497, %v269
    %v508 = vmul.f32 %v502, %v373
    %v509 = vmul.f32 %v503, %v477
    %v510 = vsub.f32 %v506, %v508
    %v511 = vsub.f32 %v507, %v509
    %v512 = vmul.f32 %v502, %v166
    %v513 = vmul.f32 %v503, %v269
    %v514 = vmul.f32 %v496, %v373
    %v515 = vmul.f32 %v497, %v477
    %v516 = vadd.f32 %v512, %v514
    %v517 = vadd.f32 %v513, %v515
    %v518 = vpack.c.bf16 %v511, %v510
    %v519 = vpack.c.bf16 %v517, %v516
    %v520 = vmul.f32 %v510, %v166
    %v521 = vmul.f32 %v511, %v269
    %v522 = vmul.f32 %v516, %v373
    %v523 = vmul.f32 %v517, %v477
    %v524 = vsub.f32 %v520, %v522
    %v525 = vsub.f32 %v521, %v523
    %v526 = vmul.f32 %v516, %v166
    %v527 = vmul.f32 %v517, %v269
    %v528 = vmul.f32 %v510, %v373
    %v529 = vmul.f32 %v511, %v477
    %v530 = vadd.f32 %v526, %v528
    %v531 = vadd.f32 %v527, %v529
    %v532 = vpack.c.bf16 %v525, %v524
    %v533 = vpack.c.bf16 %v531, %v530
    %v534 = vmul.f32 %v524, %v166
    %v535 = vmul.f32 %v525, %v269
    %v536 = vmul.f32 %v530, %v373
    %v537 = vmul.f32 %v531, %v477
    %v538 = vsub.f32 %v534, %v536
    %v539 = vsub.f32 %v535, %v537
    %v540 = vmul.f32 %v530, %v166
    %v541 = vmul.f32 %v531, %v269
    %v542 = vmul.f32 %v524, %v373
    %v543 = vmul.f32 %v525, %v477
    %v544 = vadd.f32 %v540, %v542
    %v545 = vadd.f32 %v541, %v543
    %v546 = vpack.c.bf16 %v539, %v538
    %v547 = vpack.c.bf16 %v545, %v544
    %v548 = vmul.f32 %v538, %v166
    %v549 = vmul.f32 %v539, %v269
    %v550 = vmul.f32 %v544, %v373
    %v551 = vmul.f32 %v545, %v477
    %v552 = vsub.f32 %v548, %v550
    %v553 = vsub.f32 %v549, %v551
    %v554 = vmul.f32 %v544, %v166
    %v555 = vmul.f32 %v545, %v269
    %v556 = vmul.f32 %v538, %v373
    %v557 = vmul.f32 %v539, %v477
    %v558 = vadd.f32 %v554, %v556
    %v559 = vadd.f32 %v555, %v557
    %v560 = vpack.c.bf16 %v553, %v552
    %v561 = vpack.c.bf16 %v559, %v558
    %v562 = vmul.f32 %v552, %v166
    %v563 = vmul.f32 %v553, %v269
    %v564 = vmul.f32 %v558, %v373
    %v565 = vmul.f32 %v559, %v477
    %v566 = vsub.f32 %v562, %v564
    %v567 = vsub.f32 %v563, %v565
    %v568 = vmul.f32 %v558, %v166
    %v569 = vmul.f32 %v559, %v269
    %v570 = vmul.f32 %v552, %v373
    %v571 = vmul.f32 %v553, %v477
    %v572 = vadd.f32 %v568, %v570
    %v573 = vadd.f32 %v569, %v571
    %v574 = vpack.c.bf16 %v567, %v566
    %v575 = vpack.c.bf16 %v573, %v572
    %577 = vrot.lane.b32.xlu0 %v490, 16
    %v578 = vpop.permute.xlu0 %577
    %580 = vrot.lane.b32.xlu0 %v504, 32
    %v581 = vpop.permute.xlu0 %580
    %583 = vrot.lane.b32.xlu0 %v518, 48
    %v584 = vpop.permute.xlu0 %583
    %586 = vrot.lane.b32.xlu0 %v532, 64
    %v587 = vpop.permute.xlu0 %586
    %589 = vrot.lane.b32.xlu0 %v546, 80
    %v590 = vpop.permute.xlu0 %589
    %592 = vrot.lane.b32.xlu0 %v560, 96
    %v593 = vpop.permute.xlu0 %592
    %595 = vrot.lane.b32.xlu0 %v574, 112
    %v596 = vpop.permute.xlu0 %595
    %598 = vrot.lane.b32.xlu0 %v491, 16
    %v599 = vpop.permute.xlu0 %598
    %601 = vrot.lane.b32.xlu0 %v505, 32
    %v602 = vpop.permute.xlu0 %601
    %604 = vrot.lane.b32.xlu0 %v519, 48
    %v605 = vpop.permute.xlu0 %604
    %607 = vrot.lane.b32.xlu0 %v533, 64
    %v608 = vpop.permute.xlu0 %607
    %610 = vrot.lane.b32.xlu0 %v547, 80
    %v611 = vpop.permute.xlu0 %610
    %613 = vrot.lane.b32.xlu0 %v561, 96
    %v614 = vpop.permute.xlu0 %613
    %616 = vrot.lane.b32.xlu0 %v575, 112
    %v617 = vpop.permute.xlu0 %616
    %vm618 = vcmask 130048
    %v621 = vsel %vm618, %v478, %v578
    %vm622 = vcmask 261120
    %v624 = vsel %vm622, %v621, %v581
    %vm625 = vcmask 392192
    %v627 = vsel %vm625, %v624, %v584
    %vm628 = vcmask 523264
    %v630 = vsel %vm628, %v627, %v587
    %vm631 = vcmask 654336
    %v633 = vsel %vm631, %v630, %v590
    %vm634 = vcmask 785408
    %v636 = vsel %vm634, %v633, %v593
    %vm637 = vcmask 916480
    %v639 = vsel %vm637, %v636, %v596
    %v643 = vsel %vm618, %v479, %v599
    %v645 = vsel %vm622, %v643, %v602
    %v647 = vsel %vm625, %v645, %v605
    %v649 = vsel %vm628, %v647, %v608
    %v651 = vsel %vm631, %v649, %v611
    %v653 = vsel %vm634, %v651, %v614
    %v655 = vsel %vm637, %v653, %v617
    %v657 = vld [vmem:[#allocation7] sm:$0xf]
    %v658 = vld [vmem:[#allocation7 + $0x4] sm:$0xf]
    %v659 = vld [vmem:[#allocation7 + $0x8] sm:$0xf]
    %v660 = vld [vmem:[#allocation7 + $0xc] sm:$0xf]
    %v661 = vld [vmem:[#allocation7 + $0x10] sm:$0xf]
    %v662 = vld [vmem:[#allocation7 + $0x14] sm:$0xf]
    %v663 = vld [vmem:[#allocation7 + $0x18] sm:$0xf]
    %v664 = vld [vmem:[#allocation7 + $0x1c] sm:$0xf]
    %v665 = vld [vmem:[#allocation7 + $0x20] sm:$0xf]
    %v666 = vld [vmem:[#allocation7 + $0x24] sm:$0xf]
    %v667 = vld [vmem:[#allocation7 + $0x28] sm:$0xf]
    %v668 = vld [vmem:[#allocation7 + $0x2c] sm:$0xf]
    %v669 = vld [vmem:[#allocation7 + $0x30] sm:$0xf]
    %v670 = vld [vmem:[#allocation7 + $0x34] sm:$0xf]
    %v671 = vld [vmem:[#allocation7 + $0x38] sm:$0xf]
    %v672 = vld [vmem:[#allocation7 + $0x3c] sm:$0xf]
    %v673 = vld [vmem:[#allocation7 + $0x40] sm:$0xf]
    %v674 = vld [vmem:[#allocation7 + $0x44] sm:$0xf]
    %v675 = vld [vmem:[#allocation7 + $0x48] sm:$0xf]
    %v676 = vld [vmem:[#allocation7 + $0x4c] sm:$0xf]
    %v677 = vld [vmem:[#allocation7 + $0x50] sm:$0xf]
    %v678 = vld [vmem:[#allocation7 + $0x54] sm:$0xf]
    %v679 = vld [vmem:[#allocation7 + $0x58] sm:$0xf]
    %v680 = vld [vmem:[#allocation7 + $0x5c] sm:$0xf]
    %v681 = vld [vmem:[#allocation7 + $0x60] sm:$0xf]
    %v682 = vld [vmem:[#allocation7 + $0x64] sm:$0xf]
    %v683 = vld [vmem:[#allocation7 + $0x68] sm:$0xf]
    %v684 = vld [vmem:[#allocation7 + $0x6c] sm:$0xf]
    %v685 = vld [vmem:[#allocation7 + $0x70] sm:$0xf]
    %v686 = vld [vmem:[#allocation7 + $0x74] sm:$0xf]
    %v687 = vld [vmem:[#allocation7 + $0x78] sm:$0xf]
    %v688 = vld [vmem:[#allocation7 + $0x7c] sm:$0xf]
    %v689 = vld [vmem:[%s3] sm:$0x1]
    %v690 = vlaneseq
    %v691 = vshrl.u32 %v690, 7
    %v692 = vsub.s32 0, %v691
    %v693 = vrot.slane %v689, %v692
    %v726 = vunpack.c.l.b16 %v657
    %v727 = vunpack.c.l.b16 %v658
    %v728 = vunpack.c.l.b16 %v659
    %v729 = vunpack.c.l.b16 %v660
    %v730 = vunpack.c.l.b16 %v661
    %v731 = vunpack.c.l.b16 %v662
    %v732 = vunpack.c.l.b16 %v663
    %v733 = vunpack.c.l.b16 %v664
    %v734 = vunpack.c.l.b16 %v665
    %v735 = vunpack.c.l.b16 %v666
    %v736 = vunpack.c.l.b16 %v667
    %v737 = vunpack.c.l.b16 %v668
    %v738 = vunpack.c.l.b16 %v669
    %v739 = vunpack.c.l.b16 %v670
    %v740 = vunpack.c.l.b16 %v671
    %v741 = vunpack.c.l.b16 %v672
    %v742 = vunpack.c.l.b16 %v673
    %v743 = vunpack.c.l.b16 %v674
    %v744 = vunpack.c.l.b16 %v675
    %v745 = vunpack.c.l.b16 %v676
    %v746 = vunpack.c.l.b16 %v677
    %v747 = vunpack.c.l.b16 %v678
    %v748 = vunpack.c.l.b16 %v679
    %v749 = vunpack.c.l.b16 %v680
    %v750 = vunpack.c.l.b16 %v681
    %v751 = vunpack.c.l.b16 %v682
    %v752 = vunpack.c.l.b16 %v683
    %v753 = vunpack.c.l.b16 %v684
    %v754 = vunpack.c.l.b16 %v685
    %v755 = vunpack.c.l.b16 %v686
    %v756 = vunpack.c.l.b16 %v687
    %v757 = vunpack.c.l.b16 %v688
    %v758 = vpack.c.b16 %v727, %v726
    %v759 = vpack.c.b16 %v729, %v728
    %v760 = vpack.c.b16 %v731, %v730
    %v761 = vpack.c.b16 %v733, %v732
    %v762 = vpack.c.b16 %v735, %v734
    %v763 = vpack.c.b16 %v737, %v736
    %v764 = vpack.c.b16 %v739, %v738
    %v765 = vpack.c.b16 %v741, %v740
    %v766 = vpack.c.b16 %v743, %v742
    %v767 = vpack.c.b16 %v745, %v744
    %v768 = vpack.c.b16 %v747, %v746
    %v769 = vpack.c.b16 %v749, %v748
    %v770 = vpack.c.b16 %v751, %v750
    %v771 = vpack.c.b16 %v753, %v752
    %v772 = vpack.c.b16 %v755, %v754
    %v773 = vpack.c.b16 %v757, %v756
    %790 = vmatprep.subr.bf16.mxu0 0
    %791 = vmatpush1.bf16.msra.mxu0 %v765
    %792 = vmatprep.subr.bf16.mxu0 0
    %793 = vmatpush1.bf16.msra.mxu0 %v764
    %794 = vmatprep.subr.bf16.mxu0 0
    %795 = vmatpush1.bf16.msra.mxu0 %v763
    %796 = vmatprep.subr.bf16.mxu0 0
    %797 = vmatpush1.bf16.msra.mxu0 %v762
    %798 = vmatprep.subr.bf16.mxu0 0
    %799 = vmatpush1.bf16.msra.mxu0 %v761
    %800 = vmatprep.subr.bf16.mxu0 0
    %801 = vmatpush1.bf16.msra.mxu0 %v760
    %802 = vmatprep.subr.bf16.mxu0 0
    %803 = vmatpush1.bf16.msra.mxu0 %v759
    %804 = vmatprep.subr.bf16.mxu0 0
    %805 = vmatpush1.bf16.msra.mxu0 %v758
    %806 = vmatprep.subr.bf16.mxu0 0
    %807 = vmatpush2.bf16.msra.mxu0 %v773
    %808 = vmatprep.subr.bf16.mxu0 0
    %809 = vmatpush2.bf16.msra.mxu0 %v772
    %810 = vmatprep.subr.bf16.mxu0 0
    %811 = vmatpush2.bf16.msra.mxu0 %v771
    %812 = vmatprep.subr.bf16.mxu0 0
    %813 = vmatpush2.bf16.msra.mxu0 %v770
    %814 = vmatprep.subr.bf16.mxu0 0
    %815 = vmatpush2.bf16.msra.mxu0 %v769
    %816 = vmatprep.subr.bf16.mxu0 0
    %817 = vmatpush2.bf16.msra.mxu0 %v768
    %818 = vmatprep.subr.bf16.mxu0 0
    %819 = vmatpush2.bf16.msra.mxu0 %v767
    %820 = vmatprep.subr.bf16.mxu0 0
    %821 = vmatpush2.bf16.msra.mxu0 %v766
    %822 = vmatprep.mubr.bf16.mxu0 %v655
    %823 = vmatmul.mubr.bf16.gmra.mxu0 %v639
    %v824 = vpop.f32.mrf.mxu0
    %v825 = vadd.f32 %v693, %v824
    %v826 = vpop.f32.mrf.mxu0
    %v827 = vpop.f32.mrf.mxu0
    %v828 = vadd.f32 %v693, %v827
    %v829 = vpop.f32.mrf.mxu0
    %830 = vdwg.mxu0
    %v831 = vlaneseq
    %v832 = vand.u32 %v831, 127
    %vm833 = vcmp.lt.s32.totalorder %v832, 32
    %v834 = vsel %vm833, %v825, 0.0
    %v835 = vsel %vm833, %v828, 0.0
    %836 = vadd.xlane.f32.xlu0 %v834
    %v837 = vpop.xlane.xlu0 %836
    %838 = vadd.xlane.f32.xlu0 %v835
    %v839 = vpop.xlane.xlu0 %838
    %v840 = vmul.f32 %v837, 0.03125
    %v841 = vmul.f32 %v839, 0.03125
    %v842 = vsub.f32 %v834, %v840
    %v843 = vsub.f32 %v835, %v841
    %v844 = vsel %vm833, %v842, 0.0
    %v845 = vsel %vm833, %v843, 0.0
    %v846 = vmul.f32 %v844, %v844
    %v847 = vmul.f32 %v845, %v845
    %848 = vadd.xlane.f32.xlu0 %v846
    %v849 = vpop.xlane.xlu0 %848
    %850 = vadd.xlane.f32.xlu0 %v847
    %v851 = vpop.xlane.xlu0 %850
    %v852 = vmul.f32 %v849, 0.03125
    %v853 = vmul.f32 %v851, 0.03125
    %v854 = vadd.f32 %v852, 1e-05
    %v855 = vadd.f32 %v853, 1e-05
    %v856 = vrsqrt.pop %v854
    %v857 = vrsqrt.pop %v855
    %v858 = vmul.f32 %v844, %v856
    %v859 = vmul.f32 %v845, %v857
    %v860 = vld [vmem:[%s3 + $0x1] sm:$0x1]
    %v861 = vlaneseq
    %v862 = vshrl.u32 %v861, 7
    %v863 = vsub.s32 0, %v862
    %v864 = vrot.slane %v860, %v863
    %v865 = vmul.f32 %v858, %v864
    %v866 = vmul.f32 %v859, %v864
    %v867 = vld [vmem:[%s3 + $0x2] sm:$0x1]
    %v868 = vlaneseq
    %v869 = vshrl.u32 %v868, 7
    %v870 = vsub.s32 0, %v869
    %v871 = vrot.slane %v867, %v870
    %v872 = vadd.f32 %v865, %v871
    %v873 = vadd.f32 %v866, %v871
    %874 = vst [vmem:[#allocation9] sm:$0xff] %v872
    %875 = vst [vmem:[#allocation9 + $0x8] sm:$0xff] %v873
    // Predicated region
    $region30: #{tpu_custom_call.1} parent=1 // pred_check
      _
    $region31: #{tpu_custom_call.1} parent=1 // pred_check_branch
      %877 = sbr.rel (0) target = $region33
    $region32: #{tpu_custom_call.1} parent=1 // pred_region
      %s879 = ssub.s32 256, 256
      %880 = vsyncadd [#allocation4], %s879
      %s881 = sshll.u32 [#allocation9], 4
      %s882 = int_to_ptr.vmem [resolvable:$true] %s881
      %887 = dma.vmem_to_hbm [thread:$0]  %s882, 256, %s4, [#allocation4], 128, 128, 8
    $region33: #{tpu_custom_call.1} parent=1 // pred_fallthru
      _
    // Predicated region
    $region34: #{tpu_custom_call.1} parent=1 // pred_check
      _
    $region35: #{tpu_custom_call.1} parent=1 // pred_check_branch
      %889 = sbr.rel (0) target = $region37
    $region36: #{tpu_custom_call.1} parent=1 // pred_region
      %890 = dma.done [#allocation4], 256
    $region37: #{tpu_custom_call.1} parent=1 // pred_fallthru
      _
    %891 = vsyncpa [#allocation3], 1
    %892 = vsyncpa [#allocation8], 1
    %893 = vsyncpa [#allocation4], 1
    %894 = vsyncpa [#allocation5], 1

</llo_original>
